<compile_context>
chip_gen: v5e
topology: v5e:2x2
jax: 0.10.0
libtpu: 0.0.40
codegen_flags: <defaults>
</compile_context>

<pallas_src>
import functools

import numpy as np
import jax
import jax.numpy as jnp
from jax.experimental import pallas as pl
from jax.experimental.pallas import tpu as pltpu

_LANE = 128


def _sublane_multiple(dtype) -> int:
    # f32 -> 8, bf16 -> 16, int8/fp8 -> 32 (sub-32-bit dtypes pack along sublanes).
    return max(8, 32 // jnp.dtype(dtype).itemsize)


@functools.lru_cache(maxsize=None)
def _tpu_caps():
    """Generation-aware VMEM limits and tile caps."""
    vmem_phys = None
    try:
        vmem_phys = getattr(pltpu.get_tpu_info(), "vmem_capacity_bytes", None)
    except Exception:
        vmem_phys = None
    if vmem_phys is not None and vmem_phys >= (96 << 20):
        # v5e / v6e: 128 MiB physical VMEM -> bigger tiles, longer writeback DMAs.
        return {"vmem_limit": 96 << 20, "budget": 48 << 20,
                "max_lane": 1024, "max_sublane": 1024}
    # v7x (64 MiB physical) or unknown: conservative scoped limit.
    return {"vmem_limit": 32 << 20, "budget": 14 << 20,
            "max_lane": 512, "max_sublane": 512}


def _pick_row_tile(prefix: int, sub: int, bytes_per_row: int,
                   budget: int, max_sublane: int) -> int:
    """Sublane (row) tile: full extent when small, else a sublane-aligned tile
    sized against the VMEM budget. `bytes_per_row` counts one row of every live
    double-buffered block (2 input + 2 output buffers)."""
    cap = max(1, budget // max(1, bytes_per_row))
    cap = min(cap, max_sublane)
    if prefix <= cap or prefix <= sub:
        return prefix                       # full extent is always a legal block dim
    return max(sub, (cap // sub) * sub)     # sublane-aligned tile


def _tile_last(x, count: int):
    """[x, x, ..., x] (count copies along the last axis) with O(log count)
    lane-aligned concatenations."""
    if count == 1:
        return x
    half = _tile_last(x, count // 2)
    doubled = jnp.concatenate([half, half], axis=-1)
    if count % 2:
        return jnp.concatenate([doubled, x], axis=-1)
    return doubled


# ---------------------------------------------------------------------------
# Merged path: one grid step writes ALL `count` repeats of a row tile as a
# single full-width (lane-dense, HBM-contiguous) output block.
# ---------------------------------------------------------------------------
def _repeat_merged_kernel(x_ref, o_ref, *, count, suffix):
    x = x_ref[...]
    if count == 1:
        o_ref[...] = x
    elif suffix == 1:
        # Trailing insert: pure lane broadcast, single dense store.
        o_ref[...] = jnp.broadcast_to(x, (x.shape[0], count))
    elif suffix % _LANE == 0:
        # Lane-aligned pieces: build the whole row, then one dense store.
        o_ref[...] = _tile_last(x, count)
    else:
        # Non-128-aligned suffix: assemble with unrolled slice stores (VMEM-side
        # masked stores), but the HBM writeback is still one dense, full-width
        # contiguous DMA per row tile.
        for r in range(count):  # static unroll
            o_ref[:, r * suffix:(r + 1) * suffix] = x


def _repeat_merged(x2: jax.Array, count: int) -> jax.Array:
    prefix, suffix = x2.shape
    caps = _tpu_caps()
    itemsize = jnp.dtype(x2.dtype).itemsize
    sub = _sublane_multiple(x2.dtype)

    # 2 double-buffered input blocks + 2 double-buffered output blocks per row.
    bytes_per_row = (2 * suffix + 2 * count * suffix) * itemsize
    tile_p = _pick_row_tile(prefix, sub, bytes_per_row,
                            caps["budget"], caps["max_sublane"])

    # Give v7x's 2 TensorCores at least 2 row tiles to shard when possible.
    if tile_p >= prefix and prefix >= 2 * sub:
        half = (((prefix + 1) // 2) + sub - 1) // sub * sub
        tile_p = min(tile_p, half)

    n_p = pl.cdiv(prefix, tile_p)

    kernel = functools.partial(_repeat_merged_kernel, count=count, suffix=suffix)
    return pl.pallas_call(
        kernel,
        out_shape=jax.ShapeDtypeStruct((prefix, count * suffix), x2.dtype),
        grid_spec=pltpu.PrefetchScalarGridSpec(
            num_scalar_prefetch=0,
            grid=(n_p,),
            in_specs=[pl.BlockSpec((tile_p, suffix), lambda p: (p, 0))],
            out_specs=pl.BlockSpec((tile_p, count * suffix), lambda p: (p, 0)),
        ),
        compiler_params=pltpu.CompilerParams(
            dimension_semantics=("parallel",),
            vmem_limit_bytes=caps["vmem_limit"],
        ),
        cost_estimate=pl.CostEstimate(
            flops=0, transcendentals=0,
            bytes_accessed=prefix * suffix * (1 + count) * itemsize),
    )(x2)


# ---------------------------------------------------------------------------
# Tiled fallback: count*suffix too large for VMEM, suffix a multiple of 128.
# Repeat axis in the grid; input block index constant in it -> VMEM resident.
# ---------------------------------------------------------------------------
def _repeat_tiled_kernel(x_ref, o_ref):
    o_ref[...] = x_ref[...]


def _repeat_tiled(x2: jax.Array, count: int) -> jax.Array:
    prefix, suffix = x2.shape          # suffix % 128 == 0 here
    caps = _tpu_caps()
    itemsize = jnp.dtype(x2.dtype).itemsize
    sub = _sublane_multiple(x2.dtype)

    # Lane tile: largest multiple of 128 dividing suffix, capped per generation.
    tile_s = _LANE
    for cand in range(min(caps["max_lane"], suffix), _LANE - 1, -_LANE):
        if suffix % cand == 0:
            tile_s = cand
            break
    n_s = suffix // tile_s

    bytes_per_row = (2 + 2) * tile_s * itemsize   # 2 input + 2 output buffers
    tile_p = _pick_row_tile(prefix, sub, bytes_per_row,
                            caps["budget"], caps["max_sublane"])
    n_p = pl.cdiv(prefix, tile_p)

    return pl.pallas_call(
        _repeat_tiled_kernel,
        out_shape=jax.ShapeDtypeStruct((prefix, count * suffix), x2.dtype),
        grid_spec=pltpu.PrefetchScalarGridSpec(
            num_scalar_prefetch=0,
            # Repeat axis innermost: input block index is constant in r, so the
            # input tile is fetched once and reused for all `count` writes.
            grid=(n_p, n_s, count),
            in_specs=[pl.BlockSpec((tile_p, tile_s), lambda p, s, r: (p, s))],
            out_specs=pl.BlockSpec((tile_p, tile_s),
                                   lambda p, s, r: (p, r * n_s + s)),
        ),
        compiler_params=pltpu.CompilerParams(
            # All axes are independent; 'parallel' everywhere lets both v7x
            # TensorCores contribute write bandwidth even when n_p*n_s == 1.
            dimension_semantics=("parallel", "parallel", "parallel"),
            vmem_limit_bytes=caps["vmem_limit"],
        ),
        cost_estimate=pl.CostEstimate(
            flops=0, transcendentals=0,
            bytes_accessed=prefix * suffix * (1 + count) * itemsize),
    )(x2)


# ---------------------------------------------------------------------------
# Public wrapper: matches the PyTorch RepeatVector forward pass.
# ---------------------------------------------------------------------------
def repeat_vector(x: jax.Array, count: int, from_dim: int) -> jax.Array:
    assert count >= 1
    ndim = x.ndim
    # NOTE: negative from_dim normalized to the insertion position used by the
    # reference's .view() (the torch module is ill-defined for negatives).
    if from_dim < 0:
        from_dim += ndim
    assert 0 <= from_dim <= ndim, f"from_dim={from_dim} out of range for ndim={ndim}"

    prefix_shape = x.shape[:from_dim]
    suffix_shape = x.shape[from_dim:]
    prefix = int(np.prod(prefix_shape, dtype=np.int64)) if prefix_shape else 1
    suffix = int(np.prod(suffix_shape, dtype=np.int64)) if suffix_shape else 1

    if x.size == 0:
        return jnp.broadcast_to(x.reshape(*prefix_shape, 1, *suffix_shape),
                                (*prefix_shape, count, *suffix_shape))

    x2 = x.reshape(prefix, suffix)

    caps = _tpu_caps()
    itemsize = jnp.dtype(x.dtype).itemsize
    min_rows = min(prefix, _sublane_multiple(x.dtype))
    merged_min_bytes = min_rows * (2 * suffix + 2 * count * suffix) * itemsize

    if merged_min_bytes <= caps["budget"]:
        out2 = _repeat_merged(x2, count)
    elif suffix % _LANE == 0:
        out2 = _repeat_tiled(x2, count)
    else:
        # TODO(synk): pathological shape (huge count*suffix, non-128-aligned
        # suffix) has no clean single-kernel tiling; fall back to XLA broadcast.
        out2 = jnp.reshape(
            jnp.broadcast_to(x2[:, None, :], (prefix, count, suffix)),
            (prefix, count * suffix))

    # Glue: restore the logical shape (*prefix, count, *suffix).
    return out2.reshape(*prefix_shape, count, *suffix_shape)


if __name__ == "__main__":
    key = jax.random.PRNGKey(0)
    x = jax.random.normal(key, (2, 4, 32), dtype=jnp.float32)

    # Case 1 (merged path, lane-aligned suffix = 4*32 = 128): RepeatVector(8, from_dim=1)
    #   (2, 4, 32) -> (2, 8, 4, 32)
    out = jax.block_until_ready(repeat_vector(x, count=8, from_dim=1))
    ref = jnp.broadcast_to(x[:, None, :, :], (2, 8, 4, 32))
    assert out.shape == ref.shape and out.dtype == x.dtype, out.shape
    np.testing.assert_array_equal(np.asarray(out), np.asarray(ref))

    # Case 2 (merged path, non-aligned suffix = 32): RepeatVector(5, from_dim=2)
    #   (2, 4, 32) -> (2, 4, 5, 32)
    out = jax.block_until_ready(repeat_vector(x, count=5, from_dim=2))
    ref = jnp.broadcast_to(x[:, :, None, :], (2, 4, 5, 32))
    assert out.shape == ref.shape, out.shape
    np.testing.assert_array_equal(np.asarray(out), np.asarray(ref))

    # Case 3 (merged path, trailing insert, suffix = 1): RepeatVector(4, from_dim=3)
    #   (2, 4, 32) -> (2, 4, 32, 4)
    out = jax.block_until_ready(repeat_vector(x, count=4, from_dim=3))
    ref = jnp.broadcast_to(x[..., None], (2, 4, 32, 4))
    assert out.shape == ref.shape, out.shape
    np.testing.assert_array_equal(np.asarray(out), np.asarray(ref))

    print("KERNEL_OK")
</pallas_src>

<mosaic_0001>
module attributes {stable_mosaic.version = 11 : i64} {
  func.func @_repeat_merged_kernel(%arg0: i32, %arg1: memref<2x128xf32, #tpu.memory_space<vmem>>, %arg2: memref<2x1024xf32, #tpu.memory_space<vmem>>) attributes {dimension_semantics = [#tpu.dimension_semantics<parallel>], iteration_bounds = array<i64: 1>, scalar_prefetch = 0 : i64, scratch_operands = 0 : i64, tpu.core_type = #tpu.core_type<tc>, window_params = [{transform_indices = @transform_0, window_bounds = array<i64: 2, 128>}, {transform_indices = @transform_1, window_bounds = array<i64: 2, 1024>}]} {
    %c0 = arith.constant 0 : index
    %c0_0 = arith.constant 0 : index
    %0 = vector.load %arg1[%c0, %c0_0] : memref<2x128xf32, #tpu.memory_space<vmem>>, vector<2x128xf32>
    %1 = tpu.concatenate %0, %0 in 1 : vector<2x128xf32>, vector<2x128xf32> -> vector<2x256xf32>
    %2 = tpu.concatenate %1, %1 in 1 : vector<2x256xf32>, vector<2x256xf32> -> vector<2x512xf32>
    %3 = tpu.concatenate %2, %2 in 1 : vector<2x512xf32>, vector<2x512xf32> -> vector<2x1024xf32>
    %c0_1 = arith.constant 0 : index
    %c0_2 = arith.constant 0 : index
    %4 = vector.load %arg2[%c0_1, %c0_2] : memref<2x1024xf32, #tpu.memory_space<vmem>>, vector<2x1024xf32>
    tpu.vector_store %arg2[%c0_1, %c0_2], %3 {strides = array<i32>} : memref<2x1024xf32, #tpu.memory_space<vmem>>, vector<2x1024xf32>,
    return
  }
  func.func @transform_0(%arg0: i32) -> (i32, i32) {
    %c0_i32 = arith.constant 0 : i32
    %c0_i32_0 = arith.constant 0 : i32
    return %arg0, %c0_i32 : i32, i32
  }
  func.func @transform_1(%arg0: i32) -> (i32, i32) {
    %c0_i32 = arith.constant 0 : i32
    %c0_i32_0 = arith.constant 0 : i32
    return %arg0, %c0_i32 : i32, i32
  }
}

</mosaic_0001>

<llo_original>
// kernel: tpu_custom_call.1
$region0: #{tpu_custom_call.1}
  #allocation0 [shape = 'u32[]', space=smem, size = 0x4, offset = 0x4, fixed_abs, tag = 'smem constant byte address 0x4 - core index']
  #allocation1 [shape = 'u32[72,128]{1,0:T(1,128)}', space=vmem, size = 0x9000, scoped, tag = 'internal scratch']
  %s0 = inlined_call_operand.hbm [shape: f32[2,128], index: 0, kind: input, shape index: {}]
  %s1 = inlined_call_operand.hbm [shape: f32[2,1024], index: 1, kind: output, shape index: {}]
  %s2 = sld [smem:[#allocation0]]
  $region18: #{tpu_custom_call.1} parent=0
    _
  %s4 = ssub.s32 1, %s2
  %s5 = scalar_select 0, %s4, %s2
  $region1: #{tpu_custom_call.1} parent=0
    #allocation2 [shape = 'u8[1024]{0}', space=vmem, size = 0x400, scoped, tag = 'input window, operand 0, single buffered']
    #allocation3 [shape = 's32[1]{0}', space=sflag, size = 0x4, scoped, tag = 'scoped memory for tpu_custom_call.1']
    #allocation4 [shape = 's32[1]{0}', space=sflag, size = 0x4, scoped, tag = 'scoped memory for tpu_custom_call.1']
    #allocation5 [shape = 'u8[8192]{0}', space=vmem, size = 0x2000, scoped, tag = 'output window, operand 0, single buffered']
    %6 = vsyncpa [#allocation3], 0
    %7 = vsyncpa [#allocation4], 0
    // Predicated region
    $region2: #{tpu_custom_call.1} parent=1 // pred_check
      _
    $region3: #{tpu_custom_call.1} parent=1 // pred_check_branch
      %9 = sbr.rel (0) target = $region5
    $region4: #{tpu_custom_call.1} parent=1 // pred_region
      %11 = vsyncadd [#allocation3], 0
      %s13 = sshll.u32 %s0, 4
      %s14 = int_to_ptr.hbm [resolvable:$true] %s13
      %s15 = sshll.u32 [#allocation2], 4
      %s16 = int_to_ptr.vmem [resolvable:$true] %s15
      %18 = dma.hbm_to_vmem [thread:$0]  %s14, 32, %s16, [#allocation3]
    $region5: #{tpu_custom_call.1} parent=1 // pred_fallthru
      _
    // Predicated region
    $region6: #{tpu_custom_call.1} parent=1 // pred_check
      _
    $region7: #{tpu_custom_call.1} parent=1 // pred_check_branch
      %20 = sbr.rel (0) target = $region9
    $region8: #{tpu_custom_call.1} parent=1 // pred_region
      %22 = dma.done [#allocation3], 32
    $region9: #{tpu_custom_call.1} parent=1 // pred_fallthru
      _
    %v23 = vld [vmem:[#allocation2] sm:$0x3]
    %v25 = vrot.slane %v23, 6
    %v26 = vrot.slane %v23, 4
    %v27 = vrot.slane %v23, 2
    %vm28 = vcmask 1041408
    %v29 = vsel %vm28, %v23, %v25
    %vm30 = vcmask 1045508
    %v31 = vsel %vm30, %v26, %v27
    %vm32 = vcmask 1043456
    %v33 = vsel %vm32, %v29, %v31
    %35 = vst [vmem:[#allocation5] sm:$0xff] %v33
    %36 = vst [vmem:[#allocation5 + $0x8] sm:$0xff] %v33
    // Predicated region
    $region10: #{tpu_custom_call.1} parent=1 // pred_check
      _
    $region11: #{tpu_custom_call.1} parent=1 // pred_check_branch
      %38 = sbr.rel (0) target = $region13
    $region12: #{tpu_custom_call.1} parent=1 // pred_region
      %40 = vsyncadd [#allocation4], 0
      %s42 = sshll.u32 [#allocation5], 4
      %s43 = int_to_ptr.vmem [resolvable:$true] %s42
      %s44 = sshll.u32 %s1, 4
      %s45 = int_to_ptr.hbm [resolvable:$true] %s44
      %47 = dma.vmem_to_hbm [thread:$0]  %s43, 256, %s45, [#allocation4]
    $region13: #{tpu_custom_call.1} parent=1 // pred_fallthru
      _
    // Predicated region
    $region14: #{tpu_custom_call.1} parent=1 // pred_check
      _
    $region15: #{tpu_custom_call.1} parent=1 // pred_check_branch
      %49 = sbr.rel (0) target = $region17
    $region16: #{tpu_custom_call.1} parent=1 // pred_region
      %51 = dma.done [#allocation4], 256
    $region17: #{tpu_custom_call.1} parent=1 // pred_fallthru
      _
    %52 = vsyncpa [#allocation3], 1
    %53 = vsyncpa [#allocation4], 1

</llo_original>
